<compile_context>
chip_gen: v6e
topology: v6e:2x2x1
jax: 0.10.0
libtpu: 0.0.40
codegen_flags: <defaults>
</compile_context>

<pallas_src>
import functools

import jax
import jax.numpy as jnp
from jax import lax
from jax.experimental import pallas as pl
from jax.experimental.pallas import tpu as pltpu

_LANE = 128
_TWO_PI = 6.283185307179586


def _host_fmix32(x: int) -> int:
    """murmur3 finalizer on the host (pre-mixes the user seed)."""
    x &= 0xFFFFFFFF
    x ^= x >> 16
    x = (x * 0x85EBCA6B) & 0xFFFFFFFF
    x ^= x >> 13
    x = (x * 0xC2B2AE35) & 0xFFFFFFFF
    x ^= x >> 16
    return x


def _fmix32(x):
    """murmur3 finalizer on int32 data (wrapping arithmetic, logical shifts)."""
    x = x ^ lax.shift_right_logical(x, 16)
    x = x * jnp.int32(-2048144789)      # 0x85EBCA6B
    x = x ^ lax.shift_right_logical(x, 13)
    x = x * jnp.int32(-1028477387)      # 0xC2B2AE35
    x = x ^ lax.shift_right_logical(x, 16)
    return x


def _gaussian_noise_kernel(seed_ref, x_ref, o_ref, *, sigma, block_rows):
    half = block_rows // 2
    seed = seed_ref[0]                                   # pre-mixed int32 scalar (SMEM)

    # Unique pair index per (row, col) position, global across the whole array,
    # so the noise stream is independent of the tiling / grid order.
    base = pl.program_id(0) * (half * _LANE)
    row = lax.broadcasted_iota(jnp.int32, (half, _LANE), 0)
    col = lax.broadcasted_iota(jnp.int32, (half, _LANE), 1)
    pair = base + row * _LANE + col

    # Two independent 32-bit hashes per pair -> two uniforms -> two normals.
    h1 = _fmix32((pair * 2) ^ seed)
    h2 = _fmix32((pair * 2 + 1) ^ seed)

    # Top 24 bits -> uniform in (0, 1); the +0.5 offset keeps log() finite.
    u1 = (lax.shift_right_logical(h1, 8).astype(jnp.float32) + 0.5) * (1.0 / (1 << 24))
    u2 = (lax.shift_right_logical(h2, 8).astype(jnp.float32) + 0.5) * (1.0 / (1 << 24))

    # Box-Muller: use BOTH branches so one uniform pair covers two elements.
    r = jnp.sqrt(-2.0 * jnp.log(u1))
    theta = _TWO_PI * u2
    z_top = r * jnp.cos(theta)
    z_bot = r * jnp.sin(theta)

    x_top = x_ref[:half, :].astype(jnp.float32)
    x_bot = x_ref[half:, :].astype(jnp.float32)
    o_ref[:half, :] = (x_top + sigma * z_top).astype(o_ref.dtype)
    o_ref[half:, :] = (x_bot + sigma * z_bot).astype(o_ref.dtype)


def _row_pad_unit(itemsize):
    # Half-block slices must stay aligned to the dtype's sublane tile
    # (8 rows for 4-byte types, 16 rows for 2-byte / packed types).
    return 16 if itemsize >= 4 else 32


def _pick_block_rows(rows, unit):
    # Up to 2048x128 (1 MiB f32) per tile: large DMAs -> near HBM roofline.
    # All candidates are even (Box-Muller pairs split rows) and >= unit so the
    # half-block stores remain full sublane tiles (no masked partial stores).
    for br in (2048, 1024, 512, 256, 128, 64, 32, 16):
        if br >= unit and rows % br == 0:
            return br
    return rows


def gaussian_noise(x, seed, *, sigma=0.1, training=True):
    """Pallas equivalent of the PyTorch GaussianNoise module's forward."""
    if not training:
        return x  # eval mode: identity

    orig_shape = x.shape
    n = x.size

    unit = _row_pad_unit(jnp.dtype(x.dtype).itemsize)
    tile = unit * _LANE
    padded = pl.cdiv(n, tile) * tile

    flat = x.reshape(-1)                         # native dtype, no f32 up-cast
    if padded != n:                              # fallback only for ragged sizes
        flat = jnp.pad(flat, (0, padded - n))
    rows = padded // _LANE
    x2 = flat.reshape(rows, _LANE)

    br = _pick_block_rows(rows, unit)
    grid = (rows // br,)

    # Pre-mix the seed on the host so in-kernel decorrelation is a single XOR.
    seed_mixed = _host_fmix32(int(seed))
    if seed_mixed >= (1 << 31):
        seed_mixed -= (1 << 32)
    seed_arr = jnp.asarray([seed_mixed], dtype=jnp.int32)

    n_elems = rows * _LANE
    cost = pl.CostEstimate(
        flops=12 * n_elems,                      # hash + Box-Muller + axpy (rough)
        transcendentals=2 * n_elems,             # log/sqrt/cos/sin per element pair
        bytes_accessed=2 * n_elems * x2.dtype.itemsize,
    )

    out2 = pl.pallas_call(
        functools.partial(_gaussian_noise_kernel, sigma=float(sigma), block_rows=br),
        out_shape=jax.ShapeDtypeStruct((rows, _LANE), x2.dtype),
        grid=grid,
        in_specs=[
            pl.BlockSpec(memory_space=pltpu.SMEM),          # seed scalar
            pl.BlockSpec((br, _LANE), lambda i: (i, 0)),    # x tile (VMEM)
        ],
        out_specs=pl.BlockSpec((br, _LANE), lambda i: (i, 0)),
        input_output_aliases={1: 0},                        # in-place noise add
        compiler_params=pltpu.CompilerParams(
            dimension_semantics=("parallel",)),
        cost_estimate=cost,
    )(seed_arr, x2)

    out = out2.reshape(-1)
    if padded != n:
        out = out[:n]
    return out.reshape(orig_shape)


if __name__ == "__main__":
    key = jax.random.PRNGKey(0)
    x = jax.random.normal(key, (2, 4, 16, 16), dtype=jnp.float32)  # NCHW

    sigma = 0.1

    # Training mode: x + sigma * N(0, 1) noise (generated inside the kernel).
    y_train = jax.block_until_ready(
        gaussian_noise(x, seed=1234, sigma=sigma, training=True))

    # Eval mode: identity.
    y_eval = jax.block_until_ready(
        gaussian_noise(x, seed=1234, sigma=sigma, training=False))

    assert y_train.shape == x.shape and y_train.dtype == x.dtype
    assert bool(jnp.allclose(y_eval, x))

    noise = (y_train - x) / sigma
    # The injected noise should be roughly standard normal.
    assert abs(float(jnp.mean(noise))) < 0.2
    assert 0.7 < float(jnp.std(noise)) < 1.3
    assert float(jnp.max(jnp.abs(y_train - x))) > 0.0

    print("KERNEL_OK")
</pallas_src>

<mosaic_0001>
module attributes {stable_mosaic.version = 11 : i64} {
  func.func @_gaussian_noise_kernel(%arg0: i32, %arg1: memref<1xi32, #tpu.memory_space<smem>>, %arg2: memref<16x128xf32, #tpu.memory_space<vmem>>, %arg3: memref<16x128xf32, #tpu.memory_space<vmem>>) attributes {dimension_semantics = [#tpu.dimension_semantics<parallel>], iteration_bounds = array<i64: 1>, scalar_prefetch = 0 : i64, scratch_operands = 0 : i64, tpu.core_type = #tpu.core_type<tc>, window_params = [{transform_indices = @transform_0, window_bounds = array<i64: 1>}, {transform_indices = @transform_1, window_bounds = array<i64: 16, 128>}, {transform_indices = @transform_2, window_bounds = array<i64: 16, 128>}]} {
    %c0 = arith.constant 0 : index
    %0 = memref.load %arg1[%c0] : memref<1xi32, #tpu.memory_space<smem>>
    %c1024_i32 = arith.constant 1024 : i32
    %1 = arith.muli %arg0, %c1024_i32 : i32
    %2 = tpu.iota {dimensions = array<i32: 0>} : vector<8x128xi32>
    %3 = tpu.iota {dimensions = array<i32: 1>} : vector<8x128xi32>
    %c128_i32 = arith.constant 128 : i32
    %4 = vector.broadcast %c128_i32 : i32 to vector<8x128xi32>
    %5 = arith.muli %2, %4 : vector<8x128xi32>
    %6 = vector.broadcast %1 : i32 to vector<8x128xi32>
    %7 = arith.addi %6, %5 : vector<8x128xi32>
    %8 = arith.addi %7, %3 : vector<8x128xi32>
    %c2_i32 = arith.constant 2 : i32
    %9 = vector.broadcast %c2_i32 : i32 to vector<8x128xi32>
    %10 = arith.muli %8, %9 : vector<8x128xi32>
    %11 = vector.broadcast %0 : i32 to vector<8x128xi32>
    %12 = arith.xori %10, %11 : vector<8x128xi32>
    %c16_i32 = arith.constant 16 : i32
    %13 = vector.broadcast %c16_i32 : i32 to vector<8x128xi32>
    %14 = arith.shrui %12, %13 : vector<8x128xi32>
    %15 = arith.xori %12, %14 : vector<8x128xi32>
    %c-2048144789_i32 = arith.constant -2048144789 : i32
    %16 = vector.broadcast %c-2048144789_i32 : i32 to vector<8x128xi32>
    %17 = arith.muli %15, %16 : vector<8x128xi32>
    %c13_i32 = arith.constant 13 : i32
    %18 = vector.broadcast %c13_i32 : i32 to vector<8x128xi32>
    %19 = arith.shrui %17, %18 : vector<8x128xi32>
    %20 = arith.xori %17, %19 : vector<8x128xi32>
    %c-1028477387_i32 = arith.constant -1028477387 : i32
    %21 = vector.broadcast %c-1028477387_i32 : i32 to vector<8x128xi32>
    %22 = arith.muli %20, %21 : vector<8x128xi32>
    %c16_i32_0 = arith.constant 16 : i32
    %23 = vector.broadcast %c16_i32_0 : i32 to vector<8x128xi32>
    %24 = arith.shrui %22, %23 : vector<8x128xi32>
    %25 = arith.xori %22, %24 : vector<8x128xi32>
    %c2_i32_1 = arith.constant 2 : i32
    %26 = vector.broadcast %c2_i32_1 : i32 to vector<8x128xi32>
    %27 = arith.muli %8, %26 : vector<8x128xi32>
    %c1_i32 = arith.constant 1 : i32
    %28 = vector.broadcast %c1_i32 : i32 to vector<8x128xi32>
    %29 = arith.addi %27, %28 : vector<8x128xi32>
    %30 = vector.broadcast %0 : i32 to vector<8x128xi32>
    %31 = arith.xori %29, %30 : vector<8x128xi32>
    %c16_i32_2 = arith.constant 16 : i32
    %32 = vector.broadcast %c16_i32_2 : i32 to vector<8x128xi32>
    %33 = arith.shrui %31, %32 : vector<8x128xi32>
    %34 = arith.xori %31, %33 : vector<8x128xi32>
    %c-2048144789_i32_3 = arith.constant -2048144789 : i32
    %35 = vector.broadcast %c-2048144789_i32_3 : i32 to vector<8x128xi32>
    %36 = arith.muli %34, %35 : vector<8x128xi32>
    %c13_i32_4 = arith.constant 13 : i32
    %37 = vector.broadcast %c13_i32_4 : i32 to vector<8x128xi32>
    %38 = arith.shrui %36, %37 : vector<8x128xi32>
    %39 = arith.xori %36, %38 : vector<8x128xi32>
    %c-1028477387_i32_5 = arith.constant -1028477387 : i32
    %40 = vector.broadcast %c-1028477387_i32_5 : i32 to vector<8x128xi32>
    %41 = arith.muli %39, %40 : vector<8x128xi32>
    %c16_i32_6 = arith.constant 16 : i32
    %42 = vector.broadcast %c16_i32_6 : i32 to vector<8x128xi32>
    %43 = arith.shrui %41, %42 : vector<8x128xi32>
    %44 = arith.xori %41, %43 : vector<8x128xi32>
    %c8_i32 = arith.constant 8 : i32
    %45 = vector.broadcast %c8_i32 : i32 to vector<8x128xi32>
    %46 = arith.shrui %25, %45 : vector<8x128xi32>
    %47 = arith.sitofp %46 : vector<8x128xi32> to vector<8x128xf32>
    %cst = arith.constant 5.000000e-01 : f32
    %48 = vector.broadcast %cst : f32 to vector<8x128xf32>
    %49 = arith.addf %47, %48 : vector<8x128xf32>
    %cst_7 = arith.constant 5.96046448E-8 : f32
    %50 = vector.broadcast %cst_7 : f32 to vector<8x128xf32>
    %51 = arith.mulf %49, %50 : vector<8x128xf32>
    %c8_i32_8 = arith.constant 8 : i32
    %52 = vector.broadcast %c8_i32_8 : i32 to vector<8x128xi32>
    %53 = arith.shrui %44, %52 : vector<8x128xi32>
    %54 = arith.sitofp %53 : vector<8x128xi32> to vector<8x128xf32>
    %cst_9 = arith.constant 5.000000e-01 : f32
    %55 = vector.broadcast %cst_9 : f32 to vector<8x128xf32>
    %56 = arith.addf %54, %55 : vector<8x128xf32>
    %cst_10 = arith.constant 5.96046448E-8 : f32
    %57 = vector.broadcast %cst_10 : f32 to vector<8x128xf32>
    %58 = arith.mulf %56, %57 : vector<8x128xf32>
    %59 = math.log %51 : vector<8x128xf32>
    %cst_11 = arith.constant -2.000000e+00 : f32
    %60 = vector.broadcast %cst_11 : f32 to vector<8x128xf32>
    %61 = arith.mulf %60, %59 : vector<8x128xf32>
    %62 = math.sqrt %61 : vector<8x128xf32>
    %cst_12 = arith.constant 6.28318548 : f32
    %63 = vector.broadcast %cst_12 : f32 to vector<8x128xf32>
    %64 = arith.mulf %63, %58 : vector<8x128xf32>
    %65 = math.cos %64 : vector<8x128xf32>
    %66 = arith.mulf %62, %65 : vector<8x128xf32>
    %67 = math.sin %64 : vector<8x128xf32>
    %68 = arith.mulf %62, %67 : vector<8x128xf32>
    %c0_13 = arith.constant 0 : index
    %c0_14 = arith.constant 0 : index
    %69 = vector.load %arg2[%c0_13, %c0_14] : memref<16x128xf32, #tpu.memory_space<vmem>>, vector<8x128xf32>
    %c8 = arith.constant 8 : index
    %c0_15 = arith.constant 0 : index
    %70 = vector.load %arg2[%c8, %c0_15] : memref<16x128xf32, #tpu.memory_space<vmem>>, vector<8x128xf32>
    %cst_16 = arith.constant 1.000000e-01 : f32
    %71 = vector.broadcast %cst_16 : f32 to vector<8x128xf32>
    %72 = arith.mulf %71, %66 : vector<8x128xf32>
    %73 = arith.addf %69, %72 : vector<8x128xf32>
    %c0_17 = arith.constant 0 : index
    %c0_18 = arith.constant 0 : index
    %74 = vector.load %arg3[%c0_17, %c0_18] : memref<16x128xf32, #tpu.memory_space<vmem>>, vector<8x128xf32>
    tpu.vector_store %arg3[%c0_17, %c0_18], %73 {strides = array<i32>} : memref<16x128xf32, #tpu.memory_space<vmem>>, vector<8x128xf32>,
    %cst_19 = arith.constant 1.000000e-01 : f32
    %75 = vector.broadcast %cst_19 : f32 to vector<8x128xf32>
    %76 = arith.mulf %75, %68 : vector<8x128xf32>
    %77 = arith.addf %70, %76 : vector<8x128xf32>
    %c8_20 = arith.constant 8 : index
    %c0_21 = arith.constant 0 : index
    %78 = vector.load %arg3[%c8_20, %c0_21] : memref<16x128xf32, #tpu.memory_space<vmem>>, vector<8x128xf32>
    tpu.vector_store %arg3[%c8_20, %c0_21], %77 {strides = array<i32>} : memref<16x128xf32, #tpu.memory_space<vmem>>, vector<8x128xf32>,
    return
  }
  func.func @transform_0(%arg0: i32) -> i32 {
    %c0_i32 = arith.constant 0 : i32
    %c0_i32_0 = arith.constant 0 : i32
    return %c0_i32 : i32
  }
  func.func @transform_1(%arg0: i32) -> (i32, i32) {
    %c0_i32 = arith.constant 0 : i32
    %c0_i32_0 = arith.constant 0 : i32
    return %arg0, %c0_i32 : i32, i32
  }
  func.func @transform_2(%arg0: i32) -> (i32, i32) {
    %c0_i32 = arith.constant 0 : i32
    %c0_i32_0 = arith.constant 0 : i32
    return %arg0, %c0_i32 : i32, i32
  }
}

</mosaic_0001>

<llo_original>
// kernel: tpu_custom_call.1
$region0: #{tpu_custom_call.1}
  #allocation0 [shape = 'u32[]', space=smem, size = 0x4, offset = 0x4, fixed_abs, tag = 'smem constant byte address 0x4 - core index']
  #allocation1 [shape = 'u32[144,128]{1,0:T(1,128)}', space=vmem, size = 0x12000, scoped, tag = 'internal scratch']
  #allocation2 [shape = 's32[1]{0:T(128)S(6)}', space=smem, size = 0x200, scoped, tag = 'scoped memory for tpu_custom_call.1']
  %s0 = inlined_call_operand.<no memory space> [shape: s32[1], index: 0, kind: input, shape index: {}]
  %s1 = inlined_call_operand.hbm [shape: f32[16,128], index: 1, kind: input, shape index: {}, may-alias: {1,2}]
  %s2 = inlined_call_operand.hbm [shape: f32[16,128], index: 2, kind: output, shape index: {}, may-alias: {1,2}]
  %s3 = sld [smem:[#allocation0]]
  $region22: #{tpu_custom_call.1} parent=0
    _
  %s5 = ssub.s32 1, %s3
  %s6 = scalar_select 0, %s5, %s3
  %7 = sst [smem:[#allocation2]] %s0
  $region1: #{tpu_custom_call.1} parent=0
    #allocation3 [shape = 'u8[8192]{0}', space=vmem, size = 0x2000, scoped, tag = 'input window, operand 1, single buffered']
    #allocation4 [shape = 's32[1]{0}', space=sflag, size = 0x4, scoped, tag = 'scoped memory for tpu_custom_call.1']
    #allocation5 [shape = 's32[1]{0}', space=sflag, size = 0x4, scoped, tag = 'scoped memory for tpu_custom_call.1']
    #allocation6 [shape = 'u8[8192]{0}', space=vmem, size = 0x2000, scoped, tag = 'output window, operand 0, single buffered']
    %8 = vsyncpa [#allocation4], 0
    %9 = vsyncpa [#allocation5], 0
    // Predicated region
    $region2: #{tpu_custom_call.1} parent=1 // pred_check
      _
    $region3: #{tpu_custom_call.1} parent=1 // pred_check_branch
      %11 = sbr.rel (0) target = $region5
    $region4: #{tpu_custom_call.1} parent=1 // pred_region
      _
    $region5: #{tpu_custom_call.1} parent=1 // pred_fallthru
      _
    // Predicated region
    $region6: #{tpu_custom_call.1} parent=1 // pred_check
      _
    $region7: #{tpu_custom_call.1} parent=1 // pred_check_branch
      %13 = sbr.rel (0) target = $region9
    $region8: #{tpu_custom_call.1} parent=1 // pred_region
      %s15 = ssub.s32 256, 256
      %16 = vsyncadd [#allocation4], %s15
      %s17 = sshll.u32 [#allocation3], 4
      %s18 = int_to_ptr.vmem [resolvable:$true] %s17
      %23 = dma.hbm_to_vmem [thread:$0]  %s1, 256, %s18, [#allocation4], 128, 128, 8
    $region9: #{tpu_custom_call.1} parent=1 // pred_fallthru
      _
    // Predicated region
    $region10: #{tpu_custom_call.1} parent=1 // pred_check
      _
    $region11: #{tpu_custom_call.1} parent=1 // pred_check_branch
      %25 = sbr.rel (0) target = $region13
    $region12: #{tpu_custom_call.1} parent=1 // pred_region
      %26 = dma.done [#allocation4], 256
    $region13: #{tpu_custom_call.1} parent=1 // pred_fallthru
      _
    %s27 = sld [smem:[#allocation2]]
    %s28 = smul.u32 0, 1024
    %v29 = vlaneseq
    %v30 = vshrl.u32 %v29, 7
    %v31 = vlaneseq
    %v32 = vand.u32 %v31, 127
    %v33 = vmul.u32 %v30, 128
    %v34 = vstv %s28
    %v35 = vadd.s32 %v34, %v33
    %v36 = vadd.s32 %v35, %v32
    %v37 = vmul.u32 %v36, 2
    %v38 = vstv %s27
    %v39 = vxor.u32 %v37, %v38
    %v40 = vshrl.u32 %v39, 16
    %v41 = vxor.u32 %v39, %v40
    %v42 = vmul.u32 %v41, 2246822507
    %v43 = vshrl.u32 %v42, 13
    %v44 = vxor.u32 %v42, %v43
    %v45 = vmul.u32 %v44, 3266489909
    %v46 = vshrl.u32 %v45, 16
    %v47 = vxor.u32 %v45, %v46
    %v48 = vadd.s32 %v37, 1
    %v49 = vxor.u32 %v48, %v38
    %v50 = vshrl.u32 %v49, 16
    %v51 = vxor.u32 %v49, %v50
    %v52 = vmul.u32 %v51, 2246822507
    %v53 = vshrl.u32 %v52, 13
    %v54 = vxor.u32 %v52, %v53
    %v55 = vmul.u32 %v54, 3266489909
    %v56 = vshrl.u32 %v55, 16
    %v57 = vxor.u32 %v55, %v56
    %v58 = vshrl.u32 %v47, 8
    %v59 = vcvt.s32.f32 %v58
    %v60 = vadd.f32 %v59, 0.5
    %v61 = vmul.f32 %v60, 5.9604645e-08
    %v62 = vshrl.u32 %v57, 8
    %v63 = vcvt.s32.f32 %v62
    %v64 = vadd.f32 %v63, 0.5
    %v65 = vmul.f32 %v64, 5.9604645e-08
    %v66 = vlog2.pop %v61
    %v67 = vmul.f32 %v66, 0.6931472
    %v68 = vmul.f32 %v67, -2.0
    %v69 = vrsqrt.pop %v68
    %v70 = vmul.f32 %v68, %v69
    %vm71 = vcmp.eq.f32.partialorder %v68, inf
    %v72 = vsel %vm71, %v68, %v70
    %vm73 = vcmp.eq.f32.partialorder %v68, 0.0
    %v74 = vand.u32 %v68, 2147483648
    %v75 = vsel %vm73, %v74, %v72
    %v76 = vmul.f32 %v65, 6.2831855
    %v77 = vand.u32 2147483647, %v76
    %vm78 = vcmp.le.f32.partialorder %v77, 0.7853982
    %vm79 = vcmp.lt.s32.totalorder %v76, 0
    %v80 = vand.u32 %v76, 2139095040
    %v81 = vshrl.u32 %v80, 23
    %v82 = vsub.s32 %v81, 127
    %v83 = vand.u32 2147483647, %v76
    %v84 = vand.u32 %v83, 8388607
    %v85 = vor.u32 %v84, 8388608
    %v86 = vsub.s32 0, %v85
    %v87 = vadd.s32 %v82, 1
    %vm88 = vcmp.gt.s32.totalorder %v87, 0
    %v89 = vsel %vm88, %v87, 0
    %v90 = vshrl.u32 %v89, 5
    %v91 = vand.u32 %v89, 31
    %v92 = vsub.s32 32, %v91
    %v93 = vshrl.u32 683565275, %v92
    %v94 = vshll.u32 683565275, %v91
    %v95 = vshrl.u32 2475754826, %v92
    %v96 = vor.u32 %v94, %v95
    %v97 = vshll.u32 2475754826, %v91
    %v98 = vshrl.u32 2131351028, %v92
    %v99 = vor.u32 %v97, %v98
    %v100 = vshll.u32 2131351028, %v91
    %v101 = vshrl.u32 2102212464, %v92
    %v102 = vor.u32 %v100, %v101
    %v103 = vshll.u32 2102212464, %v91
    %v104 = vshrl.u32 920167782, %v92
    %v105 = vor.u32 %v103, %v104
    %v106 = vshll.u32 920167782, %v91
    %v107 = vshrl.u32 1326507024, %v92
    %v108 = vor.u32 %v106, %v107
    %vm109 = vcmp.lt.s32.totalorder %v90, 1
    %vm110 = vcmp.lt.s32.totalorder %v90, 2
    %vm111 = vcmp.lt.s32.totalorder %v90, 3
    %vm112 = vcmp.lt.s32.totalorder %v90, 4
    %v113 = vsel %vm109, %v93, %v96
    %v114 = vsel %vm112, %v102, 2102212464
    %v115 = vsel %vm111, %v99, %v114
    %v116 = vsel %vm110, %v113, %v115
    %v117 = vsel %vm109, %v96, %v99
    %v118 = vsel %vm112, %v105, 920167782
    %v119 = vsel %vm111, %v102, %v118
    %v120 = vsel %vm110, %v117, %v119
    %v121 = vsel %vm109, %v99, %v102
    %v122 = vsel %vm112, %v108, 1326507024
    %v123 = vsel %vm111, %v105, %v122
    %v124 = vsel %vm110, %v121, %v123
    %v125 = vshll.u32 %v85, 8
    %v126 = vmul.u32.u64.compose %v125, %v124
    %v127 = vextract.low.u32 %v126
    %v128 = vextract.high.u32 %v126
    %v129 = vmul.u32.u64.compose %v125, %v120
    %v130 = vextract.low.u32 %v129
    %v131 = vextract.high.u32 %v129
    %v132 = vmul.u32 %v125, %v116
    %v133 = vadd.s32 %v128, %v130
    %vm134 = vc.u32 %v128, %v130
    %v135 = vadd.s32 %v131, 1
    %v136 = vsel %vm134, %v135, %v131
    %v137 = vadd.s32 %v132, %v136
    %v138 = vadd.s32 %v137, 536870912
    %v139 = vshrl.u32 %v138, 30
    %v140 = vshll.u32 %v139, 30
    %v141 = vsub.s32 %v137, %v140
    %vm142 = vcmp.lt.s32.totalorder %v141, 0
    %v143 = vsub.s32 0, %v141
    %v144 = vsel %vm142, %v143, %v141
    %v145 = vclz %v144
    %v146 = vsub.s32 %v145, 2
    %vm147 = vcmp.gt.s32.totalorder 0, %v146
    %v148 = vsel %vm147, 0, %v146
    %v149 = vsub.s32 32, %v148
    %v150 = vshll.u32 %v141, %v148
    %v151 = vshrl.u32 %v133, %v149
    %v152 = vor.u32 %v150, %v151
    %v153 = vsub.s32 4294967266, %v148
    %v154 = vadd.s32 %v153, 127
    %v155 = vshll.u32 %v154, 23
    %v156 = vor.u32 4788187, %v155
    %v157 = vand.u32 2147483647, %v156
    %v159 = vcvt.s32.f32 %v152
    %v160 = vmul.f32 %v159, %v157
    %v161 = vxor.u32 %v160, 2147483648
    %v162 = vsel %vm79, %v161, %v160
    %v163 = vsub.s32 4, %v139
    %v164 = vsel %vm79, %v163, %v139
    %v165 = vsel %vm78, %v76, %v162
    %v166 = vsel %vm78, 0, %v164
    %v167 = vcosq.f32.pop %v165
    %v168 = vsinq.f32.pop %v165
    %vm169 = vweird.f32 %v76
    %v170 = vand.u32 %v166, 3
    %vm171 = vcmp.lt.s32.totalorder %v170, 2
    %vm172 = vcmp.eq.s32.totalorder %v170, 0
    %v173 = vxor.u32 %v168, 2147483648
    %v174 = vsel %vm172, %v167, %v173
    %vm175 = vcmp.eq.s32.totalorder %v170, 2
    %v176 = vxor.u32 %v167, 2147483648
    %v177 = vsel %vm175, %v176, %v168
    %v178 = vsel %vm171, %v174, %v177
    %v179 = vsel %vm169, nan, %v178
    %v180 = vmul.f32 %v75, %v179
    %v181 = vand.u32 2147483647, %v76
    %vm182 = vcmp.le.f32.partialorder %v181, 0.7853982
    %vm183 = vcmp.lt.s32.totalorder %v76, 0
    %v184 = vand.u32 %v76, 2139095040
    %v185 = vshrl.u32 %v184, 23
    %v186 = vsub.s32 %v185, 127
    %v187 = vand.u32 2147483647, %v76
    %v188 = vand.u32 %v187, 8388607
    %v189 = vor.u32 %v188, 8388608
    %v190 = vsub.s32 0, %v189
    %v191 = vadd.s32 %v186, 1
    %vm192 = vcmp.gt.s32.totalorder %v191, 0
    %v193 = vsel %vm192, %v191, 0
    %v194 = vshrl.u32 %v193, 5
    %v195 = vand.u32 %v193, 31
    %v196 = vsub.s32 32, %v195
    %v197 = vshrl.u32 683565275, %v196
    %v198 = vshll.u32 683565275, %v195
    %v199 = vshrl.u32 2475754826, %v196
    %v200 = vor.u32 %v198, %v199
    %v201 = vshll.u32 2475754826, %v195
    %v202 = vshrl.u32 2131351028, %v196
    %v203 = vor.u32 %v201, %v202
    %v204 = vshll.u32 2131351028, %v195
    %v205 = vshrl.u32 2102212464, %v196
    %v206 = vor.u32 %v204, %v205
    %v207 = vshll.u32 2102212464, %v195
    %v208 = vshrl.u32 920167782, %v196
    %v209 = vor.u32 %v207, %v208
    %v210 = vshll.u32 920167782, %v195
    %v211 = vshrl.u32 1326507024, %v196
    %v212 = vor.u32 %v210, %v211
    %vm213 = vcmp.lt.s32.totalorder %v194, 1
    %vm214 = vcmp.lt.s32.totalorder %v194, 2
    %vm215 = vcmp.lt.s32.totalorder %v194, 3
    %vm216 = vcmp.lt.s32.totalorder %v194, 4
    %v217 = vsel %vm213, %v197, %v200
    %v218 = vsel %vm216, %v206, 2102212464
    %v219 = vsel %vm215, %v203, %v218
    %v220 = vsel %vm214, %v217, %v219
    %v221 = vsel %vm213, %v200, %v203
    %v222 = vsel %vm216, %v209, 920167782
    %v223 = vsel %vm215, %v206, %v222
    %v224 = vsel %vm214, %v221, %v223
    %v225 = vsel %vm213, %v203, %v206
    %v226 = vsel %vm216, %v212, 1326507024
    %v227 = vsel %vm215, %v209, %v226
    %v228 = vsel %vm214, %v225, %v227
    %v229 = vshll.u32 %v189, 8
    %v230 = vmul.u32.u64.compose %v229, %v228
    %v231 = vextract.low.u32 %v230
    %v232 = vextract.high.u32 %v230
    %v233 = vmul.u32.u64.compose %v229, %v224
    %v234 = vextract.low.u32 %v233
    %v235 = vextract.high.u32 %v233
    %v236 = vmul.u32 %v229, %v220
    %v237 = vadd.s32 %v232, %v234
    %vm238 = vc.u32 %v232, %v234
    %v239 = vadd.s32 %v235, 1
    %v240 = vsel %vm238, %v239, %v235
    %v241 = vadd.s32 %v236, %v240
    %v242 = vadd.s32 %v241, 536870912
    %v243 = vshrl.u32 %v242, 30
    %v244 = vshll.u32 %v243, 30
    %v245 = vsub.s32 %v241, %v244
    %vm246 = vcmp.lt.s32.totalorder %v245, 0
    %v247 = vsub.s32 0, %v245
    %v248 = vsel %vm246, %v247, %v245
    %v249 = vclz %v248
    %v250 = vsub.s32 %v249, 2
    %vm251 = vcmp.gt.s32.totalorder 0, %v250
    %v252 = vsel %vm251, 0, %v250
    %v253 = vsub.s32 32, %v252
    %v254 = vshll.u32 %v245, %v252
    %v255 = vshrl.u32 %v237, %v253
    %v256 = vor.u32 %v254, %v255
    %v257 = vsub.s32 4294967266, %v252
    %v258 = vadd.s32 %v257, 127
    %v259 = vshll.u32 %v258, 23
    %v260 = vor.u32 4788187, %v259
    %v261 = vand.u32 2147483647, %v260
    %v263 = vcvt.s32.f32 %v256
    %v264 = vmul.f32 %v263, %v261
    %v265 = vxor.u32 %v264, 2147483648
    %v266 = vsel %vm183, %v265, %v264
    %v267 = vsub.s32 4, %v243
    %v268 = vsel %vm183, %v267, %v243
    %v269 = vsel %vm182, %v76, %v266
    %v270 = vsel %vm182, 0, %v268
    %v271 = vcosq.f32.pop %v269
    %v272 = vsinq.f32.pop %v269
    %vm273 = vweird.f32 %v76
    %v274 = vadd.s32 %v270, 3
    %v275 = vand.u32 %v274, 3
    %vm276 = vcmp.lt.s32.totalorder %v275, 2
    %vm277 = vcmp.eq.s32.totalorder %v275, 0
    %v278 = vxor.u32 %v272, 2147483648
    %v279 = vsel %vm277, %v271, %v278
    %vm280 = vcmp.eq.s32.totalorder %v275, 2
    %v281 = vxor.u32 %v271, 2147483648
    %v282 = vsel %vm280, %v281, %v272
    %v283 = vsel %vm276, %v279, %v282
    %v284 = vsel %vm273, nan, %v283
    %v285 = vmul.f32 %v75, %v284
    %v286 = vld [vmem:[#allocation3] sm:$0xff]
    %v287 = vld [vmem:[#allocation3 + $0x8] sm:$0xff]
    %v288 = vmul.f32 %v180, 0.1
    %v289 = vadd.f32 %v286, %v288
    %290 = vst [vmem:[#allocation6] sm:$0xff] %v289
    %v291 = vmul.f32 %v285, 0.1
    %v292 = vadd.f32 %v287, %v291
    %293 = vst [vmem:[#allocation6 + $0x8] sm:$0xff] %v292
    // Predicated region
    $region14: #{tpu_custom_call.1} parent=1 // pred_check
      _
    $region15: #{tpu_custom_call.1} parent=1 // pred_check_branch
      %295 = sbr.rel (0) target = $region17
    $region16: #{tpu_custom_call.1} parent=1 // pred_region
      %s297 = ssub.s32 256, 256
      %298 = vsyncadd [#allocation5], %s297
      %s299 = sshll.u32 [#allocation6], 4
      %s300 = int_to_ptr.vmem [resolvable:$true] %s299
      %305 = dma.vmem_to_hbm [thread:$0]  %s300, 256, %s2, [#allocation5], 128, 128, 8
    $region17: #{tpu_custom_call.1} parent=1 // pred_fallthru
      _
    // Predicated region
    $region18: #{tpu_custom_call.1} parent=1 // pred_check
      _
    $region19: #{tpu_custom_call.1} parent=1 // pred_check_branch
      %307 = sbr.rel (0) target = $region21
    $region20: #{tpu_custom_call.1} parent=1 // pred_region
      %308 = dma.done [#allocation5], 256
    $region21: #{tpu_custom_call.1} parent=1 // pred_fallthru
      _
    %309 = vsyncpa [#allocation4], 1
    %310 = vsyncpa [#allocation5], 1

</llo_original>
